<compile_context>
chip_gen: v7x
topology: tpu7x:2x2x1
jax: 0.10.0
libtpu: 0.0.40
codegen_flags: <defaults>
</compile_context>

<pallas_src>
import math
import functools

import jax
import jax.numpy as jnp
from jax import lax
from jax.experimental import pallas as pl
from jax.experimental.pallas import tpu as pltpu

LANE = 128       # f32 lane width
SUBLANE = 8      # f32 sublane width
UNROLL_LIMIT = 4 # unroll hidden layers up to this depth; fori_loop beyond


def _round_up(n, m):
    return ((n + m - 1) // m) * m


def _cdiv(a, b):
    return -(-a // b)


def _act_fn(name):
    if name == "Tanh":
        return jnp.tanh
    if name == "ReLU":
        return lambda v: jnp.maximum(v, 0.0)
    if name == "Sigmoid":
        return jax.nn.sigmoid
    raise ValueError(f"unsupported activation: {name}")


def _vmem_capacity_bytes():
    """Generation-aware VMEM capacity (v5e/v6e: 128 MiB, v7x: 64 MiB per core)."""
    try:
        return int(pltpu.get_tpu_info().vmem_capacity_bytes)
    except Exception:
        return 64 << 20  # conservative fallback (v7x-sized)


@functools.lru_cache(maxsize=1)
def _single_buffer_supported():
    """One-time probe: does pipeline_mode=pl.Buffered(1) lower on this jax/TPU combo?"""
    try:
        def _copy(x_ref, o_ref):
            o_ref[...] = x_ref[...]

        spec = pl.BlockSpec((SUBLANE, LANE), lambda i: (0, 0),
                            pipeline_mode=pl.Buffered(1))
        out = pl.pallas_call(
            _copy,
            out_shape=jax.ShapeDtypeStruct((SUBLANE, LANE), jnp.float32),
            grid=(1,),
            in_specs=[spec],
            out_specs=pl.BlockSpec((SUBLANE, LANE), lambda i: (0, 0)),
        )(jnp.zeros((SUBLANE, LANE), jnp.float32))
        jax.block_until_ready(out)
        return True
    except Exception:
        return False


def _resident_spec(shape, n_grid_axes, single_buffered):
    """BlockSpec for an operand that stays resident in VMEM (constant index_map)."""
    nd = len(shape)
    if n_grid_axes == 1:
        idx = lambda i, _nd=nd: (0,) * _nd
    else:
        idx = lambda i, k, _nd=nd: (0,) * _nd
    if single_buffered:
        return pl.BlockSpec(shape, idx, pipeline_mode=pl.Buffered(1))
    return pl.BlockSpec(shape, idx)


# ----------------------------------------------------------------------------------
# Kernels
# ----------------------------------------------------------------------------------
def make_resident_kernel(n_hidden, cast_dtype, act):
    """All weights resident in VMEM.  Hidden layers unrolled (small L) or fori_loop."""
    if n_hidden > 0:
        def kernel(x_ref, w_in_ref, b_in_ref, w_hid_ref, b_hid_ref,
                   w_out_ref, b_out_ref, o_ref):
            h = act(jnp.dot(x_ref[...].astype(cast_dtype), w_in_ref[...],
                            preferred_element_type=jnp.float32) + b_in_ref[...])

            def layer(k, h):
                return act(jnp.dot(h.astype(cast_dtype), w_hid_ref[k],
                                   preferred_element_type=jnp.float32)
                           + b_hid_ref[k])

            if n_hidden <= UNROLL_LIMIT:
                for k in range(n_hidden):     # static -> unrolled, LLO sees it all
                    h = layer(k, h)
            else:                             # bounds live ranges for deep nets
                h = lax.fori_loop(0, n_hidden, layer, h)

            o_ref[...] = (jnp.dot(h.astype(cast_dtype), w_out_ref[...],
                                  preferred_element_type=jnp.float32)
                          + b_out_ref[...]).astype(o_ref.dtype)
    else:
        def kernel(x_ref, w_in_ref, b_in_ref, w_out_ref, b_out_ref, o_ref):
            h = act(jnp.dot(x_ref[...].astype(cast_dtype), w_in_ref[...],
                            preferred_element_type=jnp.float32) + b_in_ref[...])
            o_ref[...] = (jnp.dot(h.astype(cast_dtype), w_out_ref[...],
                                  preferred_element_type=jnp.float32)
                          + b_out_ref[...]).astype(o_ref.dtype)
    return kernel


def make_layer_grid_kernel(cast_dtype, act):
    """Hidden-layer index on an 'arbitrary' grid axis; activation carried in VMEM scratch."""
    def kernel(x_ref, w_in_ref, b_in_ref, w_hid_ref, b_hid_ref,
               w_out_ref, b_out_ref, o_ref, h_scr):
        k = pl.program_id(1)

        @pl.when(k == 0)
        def _():
            h_scr[...] = act(jnp.dot(x_ref[...].astype(cast_dtype), w_in_ref[...],
                                     preferred_element_type=jnp.float32)
                             + b_in_ref[...])

        h_scr[...] = act(jnp.dot(h_scr[...].astype(cast_dtype), w_hid_ref[0],
                                 preferred_element_type=jnp.float32)
                         + b_hid_ref[0])

        @pl.when(k == pl.num_programs(1) - 1)
        def _():
            o_ref[...] = (jnp.dot(h_scr[...].astype(cast_dtype), w_out_ref[...],
                                  preferred_element_type=jnp.float32)
                          + b_out_ref[...]).astype(o_ref.dtype)
    return kernel


# ----------------------------------------------------------------------------------
# Parameter preparation (done once, outside the per-call forward)
# ----------------------------------------------------------------------------------
def pad_params(params, weights_dtype=jnp.float32):
    """Zero-pad weights/biases to lane-dense (multiple-of-128) feature dims, once."""
    f32 = jnp.float32
    wd = weights_dtype
    d_in, H = params["w_in"].shape
    d_out = params["w_out"].shape[1]
    L = int(params["w_hid"].shape[0])

    d_in_p = _round_up(max(d_in, LANE), LANE)
    h_p = _round_up(max(H, LANE), LANE)
    d_out_p = _round_up(max(d_out, LANE), LANE)

    w_in = jnp.zeros((d_in_p, h_p), wd).at[:d_in, :H].set(params["w_in"].astype(wd))
    b_in = jnp.zeros((1, h_p), f32).at[:, :H].set(params["b_in"].astype(f32))
    w_out = jnp.zeros((h_p, d_out_p), wd).at[:H, :d_out].set(params["w_out"].astype(wd))
    b_out = jnp.zeros((1, d_out_p), f32).at[:, :d_out].set(params["b_out"].astype(f32))
    w_hid = jnp.zeros((L, h_p, h_p), wd)
    b_hid = jnp.zeros((L, 1, h_p), f32)
    if L > 0:
        w_hid = w_hid.at[:, :H, :H].set(params["w_hid"].astype(wd))
        b_hid = b_hid.at[:, :, :H].set(params["b_hid"].astype(f32))
    return {"w_in": w_in, "b_in": b_in, "w_hid": w_hid, "b_hid": b_hid,
            "w_out": w_out, "b_out": b_out}


# ----------------------------------------------------------------------------------
# Forward pass
# ----------------------------------------------------------------------------------
def neural_net_forward(x, pp, *, d_out, activation="Tanh",
                       batch_tile=None, force_layer_grid=False):
    """Forward pass via batch-gridded Pallas kernels.  `pp` holds pre-padded params."""
    f32 = jnp.float32
    B, d_in = x.shape
    d_in_p, h_p = pp["w_in"].shape
    d_out_p = pp["w_out"].shape[1]
    L = int(pp["w_hid"].shape[0])
    w_dtype = pp["w_in"].dtype
    w_isz = jnp.dtype(w_dtype).itemsize
    act = _act_fn(activation)

    # ---- generation-aware VMEM budget --------------------------------------------
    capacity = _vmem_capacity_bytes()
    cap = int(capacity * 0.80)               # ~51 MiB on v7x, ~102 MiB on v5e/v6e
    if batch_tile is None:
        batch_tile = 1024 if capacity >= (96 << 20) else 512

    # ---- batch tile: minimize padding, keep >= 2 tiles when possible (v7x megacore)
    n_tiles = max(1, _cdiv(B, batch_tile))
    if n_tiles == 1 and B >= 2 * SUBLANE:
        n_tiles = 2
    tb = _round_up(_cdiv(B, n_tiles), SUBLANE)

    single_buf = _single_buffer_supported()
    res_bufs = 1 if single_buf else 2        # honest accounting if Buffered(1) missing
    bias_bytes = 4 * ((L + 1) * h_p + d_out_p)

    def fit_resident(t):
        io = 2 * t * 4 * (d_in_p + d_out_p)                  # double-buffered x & o (f32)
        act_b = 3 * t * h_p * 4                              # h + matmul temporaries
        w = w_isz * (d_in_p * h_p + L * h_p * h_p + h_p * d_out_p) + bias_bytes
        return io + act_b + res_bufs * w

    def fit_layer_grid(t):
        io = 2 * t * 4 * (d_in_p + d_out_p)
        act_b = 4 * t * h_p * 4                              # scratch h + temporaries
        w_res = w_isz * (d_in_p * h_p + h_p * d_out_p) + 4 * (h_p + d_out_p)
        w_hid_tile = 2 * (w_isz * h_p * h_p + 4 * h_p)       # per-layer double-buffered
        return io + act_b + res_bufs * w_res + w_hid_tile

    use_layer_grid = bool(force_layer_grid) and L > 0
    if L > 0 and fit_resident(tb) > cap:
        use_layer_grid = True
    fit = fit_layer_grid if use_layer_grid else fit_resident
    while fit(tb) > cap and tb > SUBLANE:
        tb = _round_up(tb // 2, SUBLANE)
    # TODO(synk): if even tb=8 does not fit (enormous H), tile h_p as well.

    b_p = tb * _cdiv(B, tb)
    grid_b = b_p // tb

    # ---- pad x rows only (weights already padded once in pad_params) --------------
    xp = jnp.zeros((b_p, d_in_p), f32).at[:B, :d_in].set(x.astype(f32))

    # ---- specs / kernel ------------------------------------------------------------
    if use_layer_grid:
        grid = (grid_b, L)
        dim_sem = ("parallel", "arbitrary")
        ng = 2
        x_spec = pl.BlockSpec((tb, d_in_p), lambda i, k: (i, 0))
        o_spec = pl.BlockSpec((tb, d_out_p), lambda i, k: (i, 0))
        in_specs = [x_spec,
                    _resident_spec((d_in_p, h_p), ng, single_buf),
                    _resident_spec((1, h_p), ng, single_buf),
                    pl.BlockSpec((1, h_p, h_p), lambda i, k: (k, 0, 0)),
                    pl.BlockSpec((1, 1, h_p), lambda i, k: (k, 0, 0)),
                    _resident_spec((h_p, d_out_p), ng, single_buf),
                    _resident_spec((1, d_out_p), ng, single_buf)]
        operands = (xp, pp["w_in"], pp["b_in"], pp["w_hid"], pp["b_hid"],
                    pp["w_out"], pp["b_out"])
        kernel = make_layer_grid_kernel(w_dtype, act)
        scratch = [pltpu.VMEM((tb, h_p), jnp.float32)]
    else:
        grid = (grid_b,)
        dim_sem = ("parallel",)
        ng = 1
        x_spec = pl.BlockSpec((tb, d_in_p), lambda i: (i, 0))
        o_spec = pl.BlockSpec((tb, d_out_p), lambda i: (i, 0))
        if L > 0:
            in_specs = [x_spec,
                        _resident_spec((d_in_p, h_p), ng, single_buf),
                        _resident_spec((1, h_p), ng, single_buf),
                        _resident_spec((L, h_p, h_p), ng, single_buf),
                        _resident_spec((L, 1, h_p), ng, single_buf),
                        _resident_spec((h_p, d_out_p), ng, single_buf),
                        _resident_spec((1, d_out_p), ng, single_buf)]
            operands = (xp, pp["w_in"], pp["b_in"], pp["w_hid"], pp["b_hid"],
                        pp["w_out"], pp["b_out"])
        else:
            in_specs = [x_spec,
                        _resident_spec((d_in_p, h_p), ng, single_buf),
                        _resident_spec((1, h_p), ng, single_buf),
                        _resident_spec((h_p, d_out_p), ng, single_buf),
                        _resident_spec((1, d_out_p), ng, single_buf)]
            operands = (xp, pp["w_in"], pp["b_in"], pp["w_out"], pp["b_out"])
        kernel = make_resident_kernel(L, w_dtype, act)
        scratch = []

    # ---- cost estimate (padded dims = actual launched work) + VMEM limit ----------
    weight_bytes = w_isz * (d_in_p * h_p + L * h_p * h_p + h_p * d_out_p) + bias_bytes
    flops = 2 * b_p * (d_in_p * h_p + L * h_p * h_p + h_p * d_out_p)
    transcendentals = b_p * h_p * (L + 1) if activation != "ReLU" else 0
    bytes_accessed = 4 * b_p * (d_in_p + d_out_p) + weight_bytes
    vmem_needed = fit(tb)
    vmem_limit = int(min(cap, max(32 << 20, 2 * vmem_needed)))

    out_p = pl.pallas_call(
        kernel,
        out_shape=jax.ShapeDtypeStruct((b_p, d_out_p), f32),
        grid=grid,
        in_specs=in_specs,
        out_specs=o_spec,
        scratch_shapes=scratch,
        compiler_params=pltpu.CompilerParams(
            dimension_semantics=dim_sem,
            vmem_limit_bytes=vmem_limit),
        cost_estimate=pl.CostEstimate(
            flops=flops,
            transcendentals=transcendentals,
            bytes_accessed=bytes_accessed),
    )(*operands)

    return out_p[:B, :d_out]


# ----------------------------------------------------------------------------------
# Init + reference (mirror NeuralNet semantics)
# ----------------------------------------------------------------------------------
def init_params(key, input_dimension, output_dimension, n_hidden_layers, neurons,
                activation_function="Tanh"):
    """Xavier-uniform init (torch calculate_gain), zero biases (init_xavier semantics)."""
    gains = {"Tanh": 5.0 / 3.0, "ReLU": math.sqrt(2.0), "Sigmoid": 1.0}
    gain = gains[activation_function]

    def xavier(k, fan_in, fan_out):
        bound = gain * math.sqrt(6.0 / (fan_in + fan_out))
        return jax.random.uniform(k, (fan_in, fan_out), jnp.float32, -bound, bound)

    ks = jax.random.split(key, 2 + max(n_hidden_layers, 1))
    w_in = xavier(ks[0], input_dimension, neurons)
    if n_hidden_layers > 0:
        w_hid = jnp.stack([xavier(ks[1 + i], neurons, neurons)
                           for i in range(n_hidden_layers)], axis=0)
    else:
        w_hid = jnp.zeros((0, neurons, neurons), jnp.float32)
    w_out = xavier(ks[-1], neurons, output_dimension)
    return {
        "w_in": w_in,
        "b_in": jnp.zeros((1, neurons), jnp.float32),
        "w_hid": w_hid,
        "b_hid": jnp.zeros((n_hidden_layers, 1, neurons), jnp.float32),
        "w_out": w_out,
        "b_out": jnp.zeros((1, output_dimension), jnp.float32),
    }


def reference_forward(x, params, activation="Tanh"):
    """Pure-JAX reference (high-precision matmuls) for correctness checking."""
    act = _act_fn(activation)
    hp = lax.Precision.HIGHEST
    h = act(jnp.dot(x, params["w_in"], precision=hp) + params["b_in"])
    for k in range(params["w_hid"].shape[0]):
        h = act(jnp.dot(h, params["w_hid"][k], precision=hp) + params["b_hid"][k])
    return jnp.dot(h, params["w_out"], precision=hp) + params["b_out"]


if __name__ == "__main__":
    input_dimension = 4
    output_dimension = 2
    n_hidden_layers = 2
    neurons = 32
    batch = 8

    _single_buffer_supported()   # run the one-time probe eagerly, outside any jit trace

    key = jax.random.PRNGKey(0)
    k_x, k_p = jax.random.split(key)
    x = jax.random.normal(k_x, (batch, input_dimension), jnp.float32)

    fwd = jax.jit(neural_net_forward,
                  static_argnames=("d_out", "activation", "batch_tile",
                                   "force_layer_grid"))

    # 1) baseline: f32 weights, 2 hidden layers (resident, unrolled)
    params = init_params(k_p, input_dimension, output_dimension,
                         n_hidden_layers, neurons)
    pp = pad_params(params)                                    # padded ONCE, reused
    out = jax.block_until_ready(fwd(x, pp, d_out=output_dimension))
    ref = reference_forward(x, params)
    assert out.shape == (batch, output_dimension)
    assert jnp.allclose(out, ref, atol=1e-5, rtol=1e-5)

    # 2) no hidden layers (no zero-extent VMEM operands reach the kernel)
    params0 = init_params(k_p, input_dimension, output_dimension, 0, neurons)
    pp0 = pad_params(params0)
    out0 = jax.block_until_ready(fwd(x, pp0, d_out=output_dimension))
    assert out0.shape == (batch, output_dimension)
    assert jnp.allclose(out0, reference_forward(x, params0), atol=1e-5, rtol=1e-5)

    # 3) deeper net + multi-tile batch: exercises the fori_loop resident path and the
    #    >=2-tile grid (megacore split on v7x)
    x6 = jax.random.normal(k_x, (64, input_dimension), jnp.float32)
    params6 = init_params(k_p, input_dimension, output_dimension, 6, neurons)
    pp6 = pad_params(params6)
    out6 = jax.block_until_ready(fwd(x6, pp6, d_out=output_dimension))
    ref6 = reference_forward(x6, params6)
    assert out6.shape == (64, output_dimension)
    assert jnp.allclose(out6, ref6, atol=1e-5, rtol=1e-4)

    # 4) same net through the layer-grid path (arbitrary layer axis + VMEM carry)
    outg = jax.block_until_ready(
        fwd(x6, pp6, d_out=output_dimension, force_layer_grid=True))
    assert jnp.allclose(outg, ref6, atol=1e-5, rtol=1e-4)

    # 5) bf16 weights / f32 accumulation — validated against the f32 reference
    ppb = pad_params(params, weights_dtype=jnp.bfloat16)
    outb = jax.block_until_ready(fwd(x, ppb, d_out=output_dimension))
    assert jnp.allclose(outb, ref, atol=5e-2, rtol=5e-2)

    print("KERNEL_OK")
</pallas_src>

<mosaic_0001>
module attributes {stable_mosaic.version = 11 : i64} {
  func.func @_copy(%arg0: i32, %arg1: memref<8x128xf32, #tpu.memory_space<vmem>>, %arg2: memref<8x128xf32, #tpu.memory_space<vmem>>) attributes {dimension_semantics = [#tpu.dimension_semantics<arbitrary>], iteration_bounds = array<i64: 1>, scalar_prefetch = 0 : i64, scratch_operands = 0 : i64, tpu.core_type = #tpu.core_type<tc>, window_params = [{pipeline_mode = #tpu.pipeline_mode<synchronous>, transform_indices = @transform_0, window_bounds = array<i64: 8, 128>}, {pipeline_mode = #tpu.pipeline_mode<synchronous>, transform_indices = @transform_1, window_bounds = array<i64: 8, 128>}]} {
    %c0 = arith.constant 0 : index
    %c0_0 = arith.constant 0 : index
    %0 = vector.load %arg1[%c0, %c0_0] : memref<8x128xf32, #tpu.memory_space<vmem>>, vector<8x128xf32>
    %c0_1 = arith.constant 0 : index
    %c0_2 = arith.constant 0 : index
    %1 = vector.load %arg2[%c0_1, %c0_2] : memref<8x128xf32, #tpu.memory_space<vmem>>, vector<8x128xf32>
    tpu.vector_store %arg2[%c0_1, %c0_2], %0 {strides = array<i32>} : memref<8x128xf32, #tpu.memory_space<vmem>>, vector<8x128xf32>,
    return
  }
  func.func @transform_0(%arg0: i32) -> (i32, i32) {
    %c0_i32 = arith.constant 0 : i32
    %c0_i32_0 = arith.constant 0 : i32
    %c0_i32_1 = arith.constant 0 : i32
    return %c0_i32, %c0_i32_0 : i32, i32
  }
  func.func @transform_1(%arg0: i32) -> (i32, i32) {
    %c0_i32 = arith.constant 0 : i32
    %c0_i32_0 = arith.constant 0 : i32
    %c0_i32_1 = arith.constant 0 : i32
    return %c0_i32, %c0_i32_0 : i32, i32
  }
}

module attributes {stable_mosaic.version = 11 : i64} {
  func.func @kernel(%arg0: i32, %arg1: memref<8x128xf32, #tpu.memory_space<vmem>>, %arg2: memref<128x128xf32, #tpu.memory_space<vmem>>, %arg3: memref<1x128xf32, #tpu.memory_space<vmem>>, %arg4: memref<2x128x128xf32, #tpu.memory_space<vmem>>, %arg5: memref<2x1x128xf32, #tpu.memory_space<vmem>>, %arg6: memref<128x128xf32, #tpu.memory_space<vmem>>, %arg7: memref<1x128xf32, #tpu.memory_space<vmem>>, %arg8: memref<8x128xf32, #tpu.memory_space<vmem>>) attributes {dimension_semantics = [#tpu.dimension_semantics<parallel>], iteration_bounds = array<i64: 1>, scalar_prefetch = 0 : i64, scratch_operands = 0 : i64, tpu.core_type = #tpu.core_type<tc>, window_params = [{transform_indices = @transform_0, window_bounds = array<i64: 8, 128>}, {pipeline_mode = #tpu.pipeline_mode<synchronous>, transform_indices = @transform_1, window_bounds = array<i64: 128, 128>}, {pipeline_mode = #tpu.pipeline_mode<synchronous>, transform_indices = @transform_2, window_bounds = array<i64: 1, 128>}, {pipeline_mode = #tpu.pipeline_mode<synchronous>, transform_indices = @transform_3, window_bounds = array<i64: 2, 128, 128>}, {pipeline_mode = #tpu.pipeline_mode<synchronous>, transform_indices = @transform_4, window_bounds = array<i64: 2, 1, 128>}, {pipeline_mode = #tpu.pipeline_mode<synchronous>, transform_indices = @transform_5, window_bounds = array<i64: 128, 128>}, {pipeline_mode = #tpu.pipeline_mode<synchronous>, transform_indices = @transform_6, window_bounds = array<i64: 1, 128>}, {transform_indices = @transform_7, window_bounds = array<i64: 8, 128>}]} {
    %c0 = arith.constant 0 : index
    %c0_0 = arith.constant 0 : index
    %0 = vector.load %arg1[%c0, %c0_0] : memref<8x128xf32, #tpu.memory_space<vmem>>, vector<8x128xf32>
    %c0_1 = arith.constant 0 : index
    %c0_2 = arith.constant 0 : index
    %1 = vector.load %arg2[%c0_1, %c0_2] : memref<128x128xf32, #tpu.memory_space<vmem>>, vector<128x128xf32>
    %cst = arith.constant dense<0.000000e+00> : vector<8x128xf32>
    %2 = tpu.matmul %0, %1, %cst {dimension_numbers = #tpu.dot_dimension_numbers<[1], [0], [0], [1], [0, 0, 1, 1], [], []>} : vector<8x128xf32>, vector<128x128xf32>, vector<8x128xf32> -> vector<8x128xf32>
    %c0_3 = arith.constant 0 : index
    %c0_4 = arith.constant 0 : index
    %3 = vector.load %arg3[%c0_3, %c0_4] : memref<1x128xf32, #tpu.memory_space<vmem>>, vector<1x128xf32>
    %4 = vector.broadcast %3 : vector<1x128xf32> to vector<8x128xf32>
    %5 = arith.addf %2, %4 : vector<8x128xf32>
    %6 = math.tanh %5 : vector<8x128xf32>
    %c0_5 = arith.constant 0 : index
    %c0_6 = arith.constant 0 : index
    %c0_7 = arith.constant 0 : index
    %7 = vector.load %arg4[%c0_5, %c0_6, %c0_7] : memref<2x128x128xf32, #tpu.memory_space<vmem>>, vector<1x128x128xf32>
    %8 = vector.shape_cast %7 : vector<1x128x128xf32> to vector<128x128xf32>
    %cst_8 = arith.constant dense<0.000000e+00> : vector<8x128xf32>
    %9 = tpu.matmul %6, %8, %cst_8 {dimension_numbers = #tpu.dot_dimension_numbers<[1], [0], [0], [1], [0, 0, 1, 1], [], []>} : vector<8x128xf32>, vector<128x128xf32>, vector<8x128xf32> -> vector<8x128xf32>
    %c0_9 = arith.constant 0 : index
    %c0_10 = arith.constant 0 : index
    %c0_11 = arith.constant 0 : index
    %10 = vector.load %arg5[%c0_9, %c0_10, %c0_11] : memref<2x1x128xf32, #tpu.memory_space<vmem>>, vector<1x1x128xf32>
    %11 = vector.shape_cast %10 : vector<1x1x128xf32> to vector<1x128xf32>
    %12 = vector.broadcast %11 : vector<1x128xf32> to vector<8x128xf32>
    %13 = arith.addf %9, %12 : vector<8x128xf32>
    %14 = math.tanh %13 : vector<8x128xf32>
    %c1 = arith.constant 1 : index
    %c0_12 = arith.constant 0 : index
    %c0_13 = arith.constant 0 : index
    %15 = vector.load %arg4[%c1, %c0_12, %c0_13] : memref<2x128x128xf32, #tpu.memory_space<vmem>>, vector<1x128x128xf32>
    %16 = vector.shape_cast %15 : vector<1x128x128xf32> to vector<128x128xf32>
    %cst_14 = arith.constant dense<0.000000e+00> : vector<8x128xf32>
    %17 = tpu.matmul %14, %16, %cst_14 {dimension_numbers = #tpu.dot_dimension_numbers<[1], [0], [0], [1], [0, 0, 1, 1], [], []>} : vector<8x128xf32>, vector<128x128xf32>, vector<8x128xf32> -> vector<8x128xf32>
    %c1_15 = arith.constant 1 : index
    %c0_16 = arith.constant 0 : index
    %c0_17 = arith.constant 0 : index
    %18 = vector.load %arg5[%c1_15, %c0_16, %c0_17] : memref<2x1x128xf32, #tpu.memory_space<vmem>>, vector<1x1x128xf32>
    %19 = vector.shape_cast %18 : vector<1x1x128xf32> to vector<1x128xf32>
    %20 = vector.broadcast %19 : vector<1x128xf32> to vector<8x128xf32>
    %21 = arith.addf %17, %20 : vector<8x128xf32>
    %22 = math.tanh %21 : vector<8x128xf32>
    %c0_18 = arith.constant 0 : index
    %c0_19 = arith.constant 0 : index
    %23 = vector.load %arg6[%c0_18, %c0_19] : memref<128x128xf32, #tpu.memory_space<vmem>>, vector<128x128xf32>
    %cst_20 = arith.constant dense<0.000000e+00> : vector<8x128xf32>
    %24 = tpu.matmul %22, %23, %cst_20 {dimension_numbers = #tpu.dot_dimension_numbers<[1], [0], [0], [1], [0, 0, 1, 1], [], []>} : vector<8x128xf32>, vector<128x128xf32>, vector<8x128xf32> -> vector<8x128xf32>
    %c0_21 = arith.constant 0 : index
    %c0_22 = arith.constant 0 : index
    %25 = vector.load %arg7[%c0_21, %c0_22] : memref<1x128xf32, #tpu.memory_space<vmem>>, vector<1x128xf32>
    %26 = vector.broadcast %25 : vector<1x128xf32> to vector<8x128xf32>
    %27 = arith.addf %24, %26 : vector<8x128xf32>
    %c0_23 = arith.constant 0 : index
    %c0_24 = arith.constant 0 : index
    %28 = vector.load %arg8[%c0_23, %c0_24] : memref<8x128xf32, #tpu.memory_space<vmem>>, vector<8x128xf32>
    tpu.vector_store %arg8[%c0_23, %c0_24], %27 {strides = array<i32>} : memref<8x128xf32, #tpu.memory_space<vmem>>, vector<8x128xf32>,
    return
  }
  func.func @transform_0(%arg0: i32) -> (i32, i32) {
    %c0_i32 = arith.constant 0 : i32
    %c0_i32_0 = arith.constant 0 : i32
    return %arg0, %c0_i32 : i32, i32
  }
  func.func @transform_1(%arg0: i32) -> (i32, i32) {
    %c0_i32 = arith.constant 0 : i32
    %c0_i32_0 = arith.constant 0 : i32
    %c0_i32_1 = arith.constant 0 : i32
    return %c0_i32, %c0_i32_0 : i32, i32
  }
  func.func @transform_2(%arg0: i32) -> (i32, i32) {
    %c0_i32 = arith.constant 0 : i32
    %c0_i32_0 = arith.constant 0 : i32
    %c0_i32_1 = arith.constant 0 : i32
    return %c0_i32, %c0_i32_0 : i32, i32
  }
  func.func @transform_3(%arg0: i32) -> (i32, i32, i32) {
    %c0_i32 = arith.constant 0 : i32
    %c0_i32_0 = arith.constant 0 : i32
    %c0_i32_1 = arith.constant 0 : i32
    %c0_i32_2 = arith.constant 0 : i32
    return %c0_i32, %c0_i32_0, %c0_i32_1 : i32, i32, i32
  }
  func.func @transform_4(%arg0: i32) -> (i32, i32, i32) {
    %c0_i32 = arith.constant 0 : i32
    %c0_i32_0 = arith.constant 0 : i32
    %c0_i32_1 = arith.constant 0 : i32
    %c0_i32_2 = arith.constant 0 : i32
    return %c0_i32, %c0_i32_0, %c0_i32_1 : i32, i32, i32
  }
  func.func @transform_5(%arg0: i32) -> (i32, i32) {
    %c0_i32 = arith.constant 0 : i32
    %c0_i32_0 = arith.constant 0 : i32
    %c0_i32_1 = arith.constant 0 : i32
    return %c0_i32, %c0_i32_0 : i32, i32
  }
  func.func @transform_6(%arg0: i32) -> (i32, i32) {
    %c0_i32 = arith.constant 0 : i32
    %c0_i32_0 = arith.constant 0 : i32
    %c0_i32_1 = arith.constant 0 : i32
    return %c0_i32, %c0_i32_0 : i32, i32
  }
  func.func @transform_7(%arg0: i32) -> (i32, i32) {
    %c0_i32 = arith.constant 0 : i32
    %c0_i32_0 = arith.constant 0 : i32
    return %arg0, %c0_i32 : i32, i32
  }
}

</mosaic_0001>

<llo_original>
// kernel: tpu_custom_call.1
$region0: #{tpu_custom_call.1}
  #allocation0 [shape = 'u32[]', space=smem, size = 0x4, offset = 0x4, fixed_abs, tag = 'smem constant byte address 0x4 - core index']
  #allocation1 [shape = 'u32[144,128]{1,0:T(1,128)}', space=vmem, size = 0x12000, scoped, tag = 'internal scratch']
  %s0 = inlined_call_operand.hbm [shape: f32[8,128], index: 0, kind: input, shape index: {}]
  %s1 = inlined_call_operand.hbm [shape: f32[8,128], index: 1, kind: output, shape index: {}]
  %s2 = sld [smem:[#allocation0]]
  $region18: #{tpu_custom_call.1} parent=0
    _
  %s4 = ssub.s32 1, %s2
  %s5 = scalar_select 0, %s4, %s2
  $region1: #{tpu_custom_call.1} parent=0
    #allocation2 [shape = 'u8[4096]{0}', space=vmem, size = 0x1000, scoped, tag = 'input window, operand 0, single buffered']
    #allocation3 [shape = 's32[1]{0}', space=sflag, size = 0x4, scoped, tag = 'scoped memory for tpu_custom_call.1']
    #allocation4 [shape = 's32[1]{0}', space=sflag, size = 0x4, scoped, tag = 'scoped memory for tpu_custom_call.1']
    #allocation5 [shape = 'u8[4096]{0}', space=vmem, size = 0x1000, scoped, tag = 'output window, operand 0, single buffered']
    %6 = vsyncpa [#allocation3], 0
    %7 = vsyncpa [#allocation4], 0
    // Predicated region
    $region2: #{tpu_custom_call.1} parent=1 // pred_check
      _
    $region3: #{tpu_custom_call.1} parent=1 // pred_check_branch
      %9 = sbr.rel (0) target = $region5
    $region4: #{tpu_custom_call.1} parent=1 // pred_region
      %s11 = ssub.s32 128, 128
      %12 = vsyncadd [#allocation3], %s11
      %s14 = sshll.u32 [#allocation2], 4
      %s15 = int_to_ptr.vmem [resolvable:$true] %s14
      %17 = dma.hbm_to_vmem [thread:$0]  %s0, 128, %s15, [#allocation3]
    $region5: #{tpu_custom_call.1} parent=1 // pred_fallthru
      _
    // Predicated region
    $region6: #{tpu_custom_call.1} parent=1 // pred_check
      _
    $region7: #{tpu_custom_call.1} parent=1 // pred_check_branch
      %19 = sbr.rel (0) target = $region9
    $region8: #{tpu_custom_call.1} parent=1 // pred_region
      %20 = dma.done [#allocation3], 128
    $region9: #{tpu_custom_call.1} parent=1 // pred_fallthru
      _
    %v21 = vld [vmem:[#allocation2] sm:$0xff]
    %22 = vst [vmem:[#allocation5] sm:$0xff] %v21
    // Predicated region
    $region10: #{tpu_custom_call.1} parent=1 // pred_check
      _
    $region11: #{tpu_custom_call.1} parent=1 // pred_check_branch
      %24 = sbr.rel (0) target = $region13
    $region12: #{tpu_custom_call.1} parent=1 // pred_region
      %s26 = ssub.s32 128, 128
      %27 = vsyncadd [#allocation4], %s26
      %s29 = sshll.u32 [#allocation5], 4
      %s30 = int_to_ptr.vmem [resolvable:$true] %s29
      %32 = dma.vmem_to_hbm [thread:$0]  %s30, 128, %s1, [#allocation4]
    $region13: #{tpu_custom_call.1} parent=1 // pred_fallthru
      _
    // Predicated region
    $region14: #{tpu_custom_call.1} parent=1 // pred_check
      _
    $region15: #{tpu_custom_call.1} parent=1 // pred_check_branch
      %34 = sbr.rel (0) target = $region17
    $region16: #{tpu_custom_call.1} parent=1 // pred_region
      %35 = dma.done [#allocation4], 128
    $region17: #{tpu_custom_call.1} parent=1 // pred_fallthru
      _
    %36 = vsyncpa [#allocation3], 1
    %37 = vsyncpa [#allocation4], 1

// kernel: neural_net_forward.1
$region0: #{neural_net_forward.1}
  #allocation0 [shape = 'u32[]', space=smem, size = 0x4, offset = 0x4, fixed_abs, tag = 'smem constant byte address 0x4 - core index']
  #allocation1 [shape = 'u32[144,128]{1,0:T(1,128)}', space=vmem, size = 0x12000, scoped, tag = 'internal scratch']
  %s0 = inlined_call_operand.vmem [shape: f32[8,128], index: 0, kind: input, shape index: {}]
  %s1 = inlined_call_operand.hbm [shape: f32[128,128], index: 1, kind: input, shape index: {}]
  %s2 = inlined_call_operand.vmem [shape: f32[1,128], index: 2, kind: input, shape index: {}]
  %s3 = inlined_call_operand.hbm [shape: f32[2,128,128], index: 3, kind: input, shape index: {}]
  %s4 = inlined_call_operand.vmem [shape: f32[2,1,128], index: 4, kind: input, shape index: {}]
  %s5 = inlined_call_operand.hbm [shape: f32[128,128], index: 5, kind: input, shape index: {}]
  %s6 = inlined_call_operand.vmem [shape: f32[1,128], index: 6, kind: input, shape index: {}]
  %s7 = inlined_call_operand.vmem [shape: f32[8,128], index: 7, kind: output, shape index: {}]
  %s8 = sld [smem:[#allocation0]]
  $region50: #{neural_net_forward.1} parent=0
    _
  %s10 = ssub.s32 1, %s8
  %s11 = scalar_select 0, %s10, %s8
  $region1: #{neural_net_forward.1} parent=0
    #allocation2 [shape = 'u8[65536]{0}', space=vmem, size = 0x10000, scoped, tag = 'input window, operand 1, single buffered']
    #allocation3 [shape = 's32[1]{0}', space=sflag, size = 0x4, scoped, tag = 'scoped memory for neural_net_forward.1']
    #allocation4 [shape = 'u8[131072]{0}', space=vmem, size = 0x20000, scoped, tag = 'input window, operand 3, single buffered']
    #allocation5 [shape = 's32[1]{0}', space=sflag, size = 0x4, scoped, tag = 'scoped memory for neural_net_forward.1']
    #allocation6 [shape = 'u8[65536]{0}', space=vmem, size = 0x10000, scoped, tag = 'input window, operand 5, single buffered']
    %12 = vsyncpa [#allocation3], 0
    %13 = vsyncpa [#allocation5], 0
    // Predicated region
    $region2: #{neural_net_forward.1} parent=1 // pred_check
      _
    $region3: #{neural_net_forward.1} parent=1 // pred_check_branch
      %15 = sbr.rel (0) target = $region5
    $region4: #{neural_net_forward.1} parent=1 // pred_region
      _
    $region5: #{neural_net_forward.1} parent=1 // pred_fallthru
      _
    // Predicated region
    $region6: #{neural_net_forward.1} parent=1 // pred_check
      _
    $region7: #{neural_net_forward.1} parent=1 // pred_check_branch
      %17 = sbr.rel (0) target = $region9
    $region8: #{neural_net_forward.1} parent=1 // pred_region
      %s19 = ssub.s32 2048, 2048
      %20 = vsyncadd [#allocation3], %s19
      %s21 = sshll.u32 [#allocation2], 4
      %s22 = int_to_ptr.vmem [resolvable:$true] %s21
      %27 = dma.hbm_to_vmem [thread:$0]  %s1, 2048, %s22, [#allocation3], 128, 128, 8
    $region9: #{neural_net_forward.1} parent=1 // pred_fallthru
      _
    // Predicated region
    $region10: #{neural_net_forward.1} parent=1 // pred_check
      _
    $region11: #{neural_net_forward.1} parent=1 // pred_check_branch
      %29 = sbr.rel (0) target = $region13
    $region12: #{neural_net_forward.1} parent=1 // pred_region
      _
    $region13: #{neural_net_forward.1} parent=1 // pred_fallthru
      _
    // Predicated region
    $region14: #{neural_net_forward.1} parent=1 // pred_check
      _
    $region15: #{neural_net_forward.1} parent=1 // pred_check_branch
      %31 = sbr.rel (0) target = $region17
    $region16: #{neural_net_forward.1} parent=1 // pred_region
      %s33 = ssub.s32 4096, 4096
      %34 = vsyncadd [#allocation5], %s33
      %s35 = sshll.u32 [#allocation4], 4
      %s36 = int_to_ptr.vmem [resolvable:$true] %s35
      %41 = dma.hbm_to_vmem [thread:$0]  %s3, 4096, %s36, [#allocation5], 128, 128, 8
    $region17: #{neural_net_forward.1} parent=1 // pred_fallthru
      _
    // Predicated region
    $region18: #{neural_net_forward.1} parent=1 // pred_check
      _
    $region19: #{neural_net_forward.1} parent=1 // pred_check_branch
      %43 = sbr.rel (0) target = $region21
    $region20: #{neural_net_forward.1} parent=1 // pred_region
      _
    $region21: #{neural_net_forward.1} parent=1 // pred_fallthru
      _
    // Predicated region
    $region22: #{neural_net_forward.1} parent=1 // pred_check
      _
    $region23: #{neural_net_forward.1} parent=1 // pred_check_branch
      %45 = sbr.rel (0) target = $region25
    $region24: #{neural_net_forward.1} parent=1 // pred_region
      %s47 = ssub.s32 2048, 2048
      %48 = vsyncadd [#allocation5], %s47
      %s49 = sshll.u32 [#allocation6], 4
      %s50 = int_to_ptr.vmem [resolvable:$true] %s49
      %55 = dma.hbm_to_vmem [thread:$0]  %s5, 2048, %s50, [#allocation5], 128, 128, 8
    $region25: #{neural_net_forward.1} parent=1 // pred_fallthru
      _
    // Predicated region
    $region26: #{neural_net_forward.1} parent=1 // pred_check
      _
    $region27: #{neural_net_forward.1} parent=1 // pred_check_branch
      %57 = sbr.rel (0) target = $region29
    $region28: #{neural_net_forward.1} parent=1 // pred_region
      _
    $region29: #{neural_net_forward.1} parent=1 // pred_fallthru
      _
    // Predicated region
    $region30: #{neural_net_forward.1} parent=1 // pred_check
      _
    $region31: #{neural_net_forward.1} parent=1 // pred_check_branch
      %59 = sbr.rel (0) target = $region33
    $region32: #{neural_net_forward.1} parent=1 // pred_region
      %60 = dma.done [#allocation3], 2048
    $region33: #{neural_net_forward.1} parent=1 // pred_fallthru
      _
    // Predicated region
    $region34: #{neural_net_forward.1} parent=1 // pred_check
      _
    $region35: #{neural_net_forward.1} parent=1 // pred_check_branch
      %62 = sbr.rel (0) target = $region37
    $region36: #{neural_net_forward.1} parent=1 // pred_region
      %63 = dma.done [#allocation5], 4096
    $region37: #{neural_net_forward.1} parent=1 // pred_fallthru
      _
    // Predicated region
    $region38: #{neural_net_forward.1} parent=1 // pred_check
      _
    $region39: #{neural_net_forward.1} parent=1 // pred_check_branch
      %65 = sbr.rel (0) target = $region41
    $region40: #{neural_net_forward.1} parent=1 // pred_region
      %66 = dma.done [#allocation5], 2048
    $region41: #{neural_net_forward.1} parent=1 // pred_fallthru
      _
    %v67 = vld [vmem:[%s0] sm:$0xff]
    %v68 = vld [vmem:[#allocation2] sm:$0xff]
    %v69 = vld [vmem:[#allocation2 + $0x8] sm:$0xff]
    %v70 = vld [vmem:[#allocation2 + $0x10] sm:$0xff]
    %v71 = vld [vmem:[#allocation2 + $0x18] sm:$0xff]
    %v72 = vld [vmem:[#allocation2 + $0x20] sm:$0xff]
    %v73 = vld [vmem:[#allocation2 + $0x28] sm:$0xff]
    %v74 = vld [vmem:[#allocation2 + $0x30] sm:$0xff]
    %v75 = vld [vmem:[#allocation2 + $0x38] sm:$0xff]
    %v76 = vld [vmem:[#allocation2 + $0x40] sm:$0xff]
    %v77 = vld [vmem:[#allocation2 + $0x48] sm:$0xff]
    %v78 = vld [vmem:[#allocation2 + $0x50] sm:$0xff]
    %v79 = vld [vmem:[#allocation2 + $0x58] sm:$0xff]
    %v80 = vld [vmem:[#allocation2 + $0x60] sm:$0xff]
    %v81 = vld [vmem:[#allocation2 + $0x68] sm:$0xff]
    %v82 = vld [vmem:[#allocation2 + $0x70] sm:$0xff]
    %v83 = vld [vmem:[#allocation2 + $0x78] sm:$0xff]
    %v84 = vld [vmem:[%s2] sm:$0x1]
    %v86 = vlaneseq
    %v87 = vshrl.u32 %v86, 7
    %v88 = vsub.s32 0, %v87
    %v89 = vrot.slane %v84, %v88
    %91 = vmatprep.subr.mxu0 0.0
    %92 = vmatpush1.msra.mxu0 %v68
    %93 = vmatprep.subr.mxu0 0.0
    %94 = vmatpush1.msra.mxu0 %v69
    %95 = vmatprep.subr.mxu0 0.0
    %96 = vmatpush1.msra.mxu0 %v70
    %97 = vmatprep.subr.mxu0 0.0
    %98 = vmatpush1.msra.mxu0 %v71
    %99 = vmatprep.subr.mxu0 0.0
    %100 = vmatpush1.msra.mxu0 %v72
    %101 = vmatprep.subr.mxu0 0.0
    %102 = vmatpush1.msra.mxu0 %v73
    %103 = vmatprep.subr.mxu0 0.0
    %104 = vmatpush1.msra.mxu0 %v74
    %105 = vmatprep.subr.mxu0 0.0
    %106 = vmatpush1.msra.mxu0 %v75
    %107 = vmatprep.subr.mxu0 0.0
    %108 = vmatpush1.msra.mxu0 %v76
    %109 = vmatprep.subr.mxu0 0.0
    %110 = vmatpush1.msra.mxu0 %v77
    %111 = vmatprep.subr.mxu0 0.0
    %112 = vmatpush1.msra.mxu0 %v78
    %113 = vmatprep.subr.mxu0 0.0
    %114 = vmatpush1.msra.mxu0 %v79
    %115 = vmatprep.subr.mxu0 0.0
    %116 = vmatpush1.msra.mxu0 %v80
    %117 = vmatprep.subr.mxu0 0.0
    %118 = vmatpush1.msra.mxu0 %v81
    %119 = vmatprep.subr.mxu0 0.0
    %120 = vmatpush1.msra.mxu0 %v82
    %121 = vmatprep.subr.mxu0 0.0
    %122 = vmatpush1.msra.mxu0 %v83
    %123 = vmatprep.subr.mxu0 0.0
    %124 = vmatpush1.msra.mxu0 0.0
    %125 = vmatprep.subr.mxu0 0.0
    %126 = vmatpush1.msra.mxu0 0.0
    %127 = vmatprep.subr.mxu0 0.0
    %128 = vmatpush1.msra.mxu0 0.0
    %129 = vmatprep.subr.mxu0 0.0
    %130 = vmatpush1.msra.mxu0 0.0
    %131 = vmatprep.subr.mxu0 0.0
    %132 = vmatpush1.msra.mxu0 0.0
    %133 = vmatprep.subr.mxu0 0.0
    %134 = vmatpush1.msra.mxu0 0.0
    %135 = vmatprep.subr.mxu0 0.0
    %136 = vmatpush1.msra.mxu0 0.0
    %137 = vmatprep.subr.mxu0 0.0
    %138 = vmatpush1.msra.mxu0 0.0
    %139 = vmatprep.subr.mxu0 0.0
    %140 = vmatpush1.msra.mxu0 0.0
    %141 = vmatprep.subr.mxu0 0.0
    %142 = vmatpush1.msra.mxu0 0.0
    %143 = vmatprep.subr.mxu0 0.0
    %144 = vmatpush1.msra.mxu0 0.0
    %145 = vmatprep.subr.mxu0 0.0
    %146 = vmatpush1.msra.mxu0 0.0
    %147 = vmatprep.subr.mxu0 0.0
    %148 = vmatpush1.msra.mxu0 0.0
    %149 = vmatprep.subr.mxu0 0.0
    %150 = vmatpush1.msra.mxu0 0.0
    %151 = vmatprep.subr.mxu0 0.0
    %152 = vmatpush1.msra.mxu0 0.0
    %153 = vmatprep.subr.mxu0 0.0
    %154 = vmatpush1.msra.mxu0 0.0
    %155 = vmatprep.mubr.f32.mxu0 0.0
    %156 = vmatmul.mubr.f32.gmra.mrb[0].mxu0 %v67
    %v157 = vpop.f32.mrb[0].mxu0
    %v158 = vadd.f32 %v89, %v157
    %v159 = vpop.f32.mrb[0].mxu0
    %160 = vdwg.mxu0
    %v161 = vtanh.pop %v158
    %v162 = vld [vmem:[#allocation4] sm:$0xff]
    %v163 = vld [vmem:[#allocation4 + $0x8] sm:$0xff]
    %v164 = vld [vmem:[#allocation4 + $0x10] sm:$0xff]
    %v165 = vld [vmem:[#allocation4 + $0x18] sm:$0xff]
    %v166 = vld [vmem:[#allocation4 + $0x20] sm:$0xff]
    %v167 = vld [vmem:[#allocation4 + $0x28] sm:$0xff]
    %v168 = vld [vmem:[#allocation4 + $0x30] sm:$0xff]
    %v169 = vld [vmem:[#allocation4 + $0x38] sm:$0xff]
    %v170 = vld [vmem:[#allocation4 + $0x40] sm:$0xff]
    %v171 = vld [vmem:[#allocation4 + $0x48] sm:$0xff]
    %v172 = vld [vmem:[#allocation4 + $0x50] sm:$0xff]
    %v173 = vld [vmem:[#allocation4 + $0x58] sm:$0xff]
    %v174 = vld [vmem:[#allocation4 + $0x60] sm:$0xff]
    %v175 = vld [vmem:[#allocation4 + $0x68] sm:$0xff]
    %v176 = vld [vmem:[#allocation4 + $0x70] sm:$0xff]
    %v177 = vld [vmem:[#allocation4 + $0x78] sm:$0xff]
    %v178 = vld [vmem:[%s4] sm:$0x1]
    %v180 = vlaneseq
    %v181 = vshrl.u32 %v180, 7
    %v182 = vsub.s32 0, %v181
    %v183 = vrot.slane %v178, %v182
    %185 = vmatprep.subr.mxu0 0.0
    %186 = vmatpush1.msra.mxu0 %v162
    %187 = vmatprep.subr.mxu0 0.0
    %188 = vmatpush1.msra.mxu0 %v163
    %189 = vmatprep.subr.mxu0 0.0
    %190 = vmatpush1.msra.mxu0 %v164
    %191 = vmatprep.subr.mxu0 0.0
    %192 = vmatpush1.msra.mxu0 %v165
    %193 = vmatprep.subr.mxu0 0.0
    %194 = vmatpush1.msra.mxu0 %v166
    %195 = vmatprep.subr.mxu0 0.0
    %196 = vmatpush1.msra.mxu0 %v167
    %197 = vmatprep.subr.mxu0 0.0
    %198 = vmatpush1.msra.mxu0 %v168
    %199 = vmatprep.subr.mxu0 0.0
    %200 = vmatpush1.msra.mxu0 %v169
    %201 = vmatprep.subr.mxu0 0.0
    %202 = vmatpush1.msra.mxu0 %v170
    %203 = vmatprep.subr.mxu0 0.0
    %204 = vmatpush1.msra.mxu0 %v171
    %205 = vmatprep.subr.mxu0 0.0
    %206 = vmatpush1.msra.mxu0 %v172
    %207 = vmatprep.subr.mxu0 0.0
    %208 = vmatpush1.msra.mxu0 %v173
    %209 = vmatprep.subr.mxu0 0.0
    %210 = vmatpush1.msra.mxu0 %v174
    %211 = vmatprep.subr.mxu0 0.0
    %212 = vmatpush1.msra.mxu0 %v175
    %213 = vmatprep.subr.mxu0 0.0
    %214 = vmatpush1.msra.mxu0 %v176
    %215 = vmatprep.subr.mxu0 0.0
    %216 = vmatpush1.msra.mxu0 %v177
    %217 = vmatprep.subr.mxu0 0.0
    %218 = vmatpush1.msra.mxu0 0.0
    %219 = vmatprep.subr.mxu0 0.0
    %220 = vmatpush1.msra.mxu0 0.0
    %221 = vmatprep.subr.mxu0 0.0
    %222 = vmatpush1.msra.mxu0 0.0
    %223 = vmatprep.subr.mxu0 0.0
    %224 = vmatpush1.msra.mxu0 0.0
    %225 = vmatprep.subr.mxu0 0.0
    %226 = vmatpush1.msra.mxu0 0.0
    %227 = vmatprep.subr.mxu0 0.0
    %228 = vmatpush1.msra.mxu0 0.0
    %229 = vmatprep.subr.mxu0 0.0
    %230 = vmatpush1.msra.mxu0 0.0
    %231 = vmatprep.subr.mxu0 0.0
    %232 = vmatpush1.msra.mxu0 0.0
    %233 = vmatprep.subr.mxu0 0.0
    %234 = vmatpush1.msra.mxu0 0.0
    %235 = vmatprep.subr.mxu0 0.0
    %236 = vmatpush1.msra.mxu0 0.0
    %237 = vmatprep.subr.mxu0 0.0
    %238 = vmatpush1.msra.mxu0 0.0
    %239 = vmatprep.subr.mxu0 0.0
    %240 = vmatpush1.msra.mxu0 0.0
    %241 = vmatprep.subr.mxu0 0.0
    %242 = vmatpush1.msra.mxu0 0.0
    %243 = vmatprep.subr.mxu0 0.0
    %244 = vmatpush1.msra.mxu0 0.0
    %245 = vmatprep.subr.mxu0 0.0
    %246 = vmatpush1.msra.mxu0 0.0
    %247 = vmatprep.subr.mxu0 0.0
    %248 = vmatpush1.msra.mxu0 0.0
    %249 = vmatprep.mubr.f32.mxu0 0.0
    %250 = vmatmul.mubr.f32.gmra.mrb[0].mxu0 %v161
    %v251 = vpop.f32.mrb[0].mxu0
    %v252 = vadd.f32 %v183, %v251
    %v253 = vpop.f32.mrb[0].mxu0
    %254 = vdwg.mxu0
    %v255 = vtanh.pop %v252
    %s256 = scalar_lea.vmem [#allocation4], 128
    %v257 = vld [vmem:[%s256] sm:$0xff]
    %v258 = vld [vmem:[%s256 + $0x8] sm:$0xff]
    %v259 = vld [vmem:[%s256 + $0x10] sm:$0xff]
    %v260 = vld [vmem:[%s256 + $0x18] sm:$0xff]
    %v261 = vld [vmem:[%s256 + $0x20] sm:$0xff]
    %v262 = vld [vmem:[%s256 + $0x28] sm:$0xff]
    %v263 = vld [vmem:[%s256 + $0x30] sm:$0xff]
    %v264 = vld [vmem:[%s256 + $0x38] sm:$0xff]
    %v265 = vld [vmem:[%s256 + $0x40] sm:$0xff]
    %v266 = vld [vmem:[%s256 + $0x48] sm:$0xff]
    %v267 = vld [vmem:[%s256 + $0x50] sm:$0xff]
    %v268 = vld [vmem:[%s256 + $0x58] sm:$0xff]
    %v269 = vld [vmem:[%s256 + $0x60] sm:$0xff]
    %v270 = vld [vmem:[%s256 + $0x68] sm:$0xff]
    %v271 = vld [vmem:[%s256 + $0x70] sm:$0xff]
    %v272 = vld [vmem:[%s256 + $0x78] sm:$0xff]
    %s273 = scalar_lea.vmem %s4, 1
    %v274 = vld [vmem:[%s273] sm:$0x1]
    %v276 = vlaneseq
    %v277 = vshrl.u32 %v276, 7
    %v278 = vsub.s32 0, %v277
    %v279 = vrot.slane %v274, %v278
    %281 = vmatprep.subr.mxu0 0.0
    %282 = vmatpush1.msra.mxu0 %v257
    %283 = vmatprep.subr.mxu0 0.0
    %284 = vmatpush1.msra.mxu0 %v258
    %285 = vmatprep.subr.mxu0 0.0
    %286 = vmatpush1.msra.mxu0 %v259
    %287 = vmatprep.subr.mxu0 0.0
    %288 = vmatpush1.msra.mxu0 %v260
    %289 = vmatprep.subr.mxu0 0.0
    %290 = vmatpush1.msra.mxu0 %v261
    %291 = vmatprep.subr.mxu0 0.0
    %292 = vmatpush1.msra.mxu0 %v262
    %293 = vmatprep.subr.mxu0 0.0
    %294 = vmatpush1.msra.mxu0 %v263
    %295 = vmatprep.subr.mxu0 0.0
    %296 = vmatpush1.msra.mxu0 %v264
    %297 = vmatprep.subr.mxu0 0.0
    %298 = vmatpush1.msra.mxu0 %v265
    %299 = vmatprep.subr.mxu0 0.0
    %300 = vmatpush1.msra.mxu0 %v266
    %301 = vmatprep.subr.mxu0 0.0
    %302 = vmatpush1.msra.mxu0 %v267
    %303 = vmatprep.subr.mxu0 0.0
    %304 = vmatpush1.msra.mxu0 %v268
    %305 = vmatprep.subr.mxu0 0.0
    %306 = vmatpush1.msra.mxu0 %v269
    %307 = vmatprep.subr.mxu0 0.0
    %308 = vmatpush1.msra.mxu0 %v270
    %309 = vmatprep.subr.mxu0 0.0
    %310 = vmatpush1.msra.mxu0 %v271
    %311 = vmatprep.subr.mxu0 0.0
    %312 = vmatpush1.msra.mxu0 %v272
    %313 = vmatprep.subr.mxu0 0.0
    %314 = vmatpush1.msra.mxu0 0.0
    %315 = vmatprep.subr.mxu0 0.0
    %316 = vmatpush1.msra.mxu0 0.0
    %317 = vmatprep.subr.mxu0 0.0
    %318 = vmatpush1.msra.mxu0 0.0
    %319 = vmatprep.subr.mxu0 0.0
    %320 = vmatpush1.msra.mxu0 0.0
    %321 = vmatprep.subr.mxu0 0.0
    %322 = vmatpush1.msra.mxu0 0.0
    %323 = vmatprep.subr.mxu0 0.0
    %324 = vmatpush1.msra.mxu0 0.0
    %325 = vmatprep.subr.mxu0 0.0
    %326 = vmatpush1.msra.mxu0 0.0
    %327 = vmatprep.subr.mxu0 0.0
    %328 = vmatpush1.msra.mxu0 0.0
    %329 = vmatprep.subr.mxu0 0.0
    %330 = vmatpush1.msra.mxu0 0.0
    %331 = vmatprep.subr.mxu0 0.0
    %332 = vmatpush1.msra.mxu0 0.0
    %333 = vmatprep.subr.mxu0 0.0
    %334 = vmatpush1.msra.mxu0 0.0
    %335 = vmatprep.subr.mxu0 0.0
    %336 = vmatpush1.msra.mxu0 0.0
    %337 = vmatprep.subr.mxu0 0.0
    %338 = vmatpush1.msra.mxu0 0.0
    %339 = vmatprep.subr.mxu0 0.0
    %340 = vmatpush1.msra.mxu0 0.0
    %341 = vmatprep.subr.mxu0 0.0
    %342 = vmatpush1.msra.mxu0 0.0
    %343 = vmatprep.subr.mxu0 0.0
    %344 = vmatpush1.msra.mxu0 0.0
    %345 = vmatprep.mubr.f32.mxu0 0.0
    %346 = vmatmul.mubr.f32.gmra.mrb[0].mxu0 %v255
    %v347 = vpop.f32.mrb[0].mxu0
    %v348 = vadd.f32 %v279, %v347
    %v349 = vpop.f32.mrb[0].mxu0
    %350 = vdwg.mxu0
    %v351 = vtanh.pop %v348
    %v352 = vld [vmem:[#allocation6] sm:$0xff]
    %v353 = vld [vmem:[#allocation6 + $0x8] sm:$0xff]
    %v354 = vld [vmem:[#allocation6 + $0x10] sm:$0xff]
    %v355 = vld [vmem:[#allocation6 + $0x18] sm:$0xff]
    %v356 = vld [vmem:[#allocation6 + $0x20] sm:$0xff]
    %v357 = vld [vmem:[#allocation6 + $0x28] sm:$0xff]
    %v358 = vld [vmem:[#allocation6 + $0x30] sm:$0xff]
    %v359 = vld [vmem:[#allocation6 + $0x38] sm:$0xff]
    %v360 = vld [vmem:[#allocation6 + $0x40] sm:$0xff]
    %v361 = vld [vmem:[#allocation6 + $0x48] sm:$0xff]
    %v362 = vld [vmem:[#allocation6 + $0x50] sm:$0xff]
    %v363 = vld [vmem:[#allocation6 + $0x58] sm:$0xff]
    %v364 = vld [vmem:[#allocation6 + $0x60] sm:$0xff]
    %v365 = vld [vmem:[#allocation6 + $0x68] sm:$0xff]
    %v366 = vld [vmem:[#allocation6 + $0x70] sm:$0xff]
    %v367 = vld [vmem:[#allocation6 + $0x78] sm:$0xff]
    %v368 = vld [vmem:[%s6] sm:$0x1]
    %v370 = vlaneseq
    %v371 = vshrl.u32 %v370, 7
    %v372 = vsub.s32 0, %v371
    %v373 = vrot.slane %v368, %v372
    %375 = vmatprep.subr.mxu0 0.0
    %376 = vmatpush1.msra.mxu0 %v352
    %377 = vmatprep.subr.mxu0 0.0
    %378 = vmatpush1.msra.mxu0 %v353
    %379 = vmatprep.subr.mxu0 0.0
    %380 = vmatpush1.msra.mxu0 %v354
    %381 = vmatprep.subr.mxu0 0.0
    %382 = vmatpush1.msra.mxu0 %v355
    %383 = vmatprep.subr.mxu0 0.0
    %384 = vmatpush1.msra.mxu0 %v356
    %385 = vmatprep.subr.mxu0 0.0
    %386 = vmatpush1.msra.mxu0 %v357
    %387 = vmatprep.subr.mxu0 0.0
    %388 = vmatpush1.msra.mxu0 %v358
    %389 = vmatprep.subr.mxu0 0.0
    %390 = vmatpush1.msra.mxu0 %v359
    %391 = vmatprep.subr.mxu0 0.0
    %392 = vmatpush1.msra.mxu0 %v360
    %393 = vmatprep.subr.mxu0 0.0
    %394 = vmatpush1.msra.mxu0 %v361
    %395 = vmatprep.subr.mxu0 0.0
    %396 = vmatpush1.msra.mxu0 %v362
    %397 = vmatprep.subr.mxu0 0.0
    %398 = vmatpush1.msra.mxu0 %v363
    %399 = vmatprep.subr.mxu0 0.0
    %400 = vmatpush1.msra.mxu0 %v364
    %401 = vmatprep.subr.mxu0 0.0
    %402 = vmatpush1.msra.mxu0 %v365
    %403 = vmatprep.subr.mxu0 0.0
    %404 = vmatpush1.msra.mxu0 %v366
    %405 = vmatprep.subr.mxu0 0.0
    %406 = vmatpush1.msra.mxu0 %v367
    %407 = vmatprep.subr.mxu0 0.0
    %408 = vmatpush1.msra.mxu0 0.0
    %409 = vmatprep.subr.mxu0 0.0
    %410 = vmatpush1.msra.mxu0 0.0
    %411 = vmatprep.subr.mxu0 0.0
    %412 = vmatpush1.msra.mxu0 0.0
    %413 = vmatprep.subr.mxu0 0.0
    %414 = vmatpush1.msra.mxu0 0.0
    %415 = vmatprep.subr.mxu0 0.0
    %416 = vmatpush1.msra.mxu0 0.0
    %417 = vmatprep.subr.mxu0 0.0
    %418 = vmatpush1.msra.mxu0 0.0
    %419 = vmatprep.subr.mxu0 0.0
    %420 = vmatpush1.msra.mxu0 0.0
    %421 = vmatprep.subr.mxu0 0.0
    %422 = vmatpush1.msra.mxu0 0.0
    %423 = vmatprep.subr.mxu0 0.0
    %424 = vmatpush1.msra.mxu0 0.0
    %425 = vmatprep.subr.mxu0 0.0
    %426 = vmatpush1.msra.mxu0 0.0
    %427 = vmatprep.subr.mxu0 0.0
    %428 = vmatpush1.msra.mxu0 0.0
    %429 = vmatprep.subr.mxu0 0.0
    %430 = vmatpush1.msra.mxu0 0.0
    %431 = vmatprep.subr.mxu0 0.0
    %432 = vmatpush1.msra.mxu0 0.0
    %433 = vmatprep.subr.mxu0 0.0
    %434 = vmatpush1.msra.mxu0 0.0
    %435 = vmatprep.subr.mxu0 0.0
    %436 = vmatpush1.msra.mxu0 0.0
    %437 = vmatprep.subr.mxu0 0.0
    %438 = vmatpush1.msra.mxu0 0.0
    %439 = vmatprep.mubr.f32.mxu0 0.0
    %440 = vmatmul.mubr.f32.gmra.mrb[0].mxu0 %v351
    %v441 = vpop.f32.mrb[0].mxu0
    %v442 = vadd.f32 %v373, %v441
    %v443 = vpop.f32.mrb[0].mxu0
    %444 = vdwg.mxu0
    %445 = vst [vmem:[%s7] sm:$0xff] %v442
    // Predicated region
    $region42: #{neural_net_forward.1} parent=1 // pred_check
      _
    $region43: #{neural_net_forward.1} parent=1 // pred_check_branch
      %447 = sbr.rel (0) target = $region45
    $region44: #{neural_net_forward.1} parent=1 // pred_region
      _
    $region45: #{neural_net_forward.1} parent=1 // pred_fallthru
      _
    // Predicated region
    $region46: #{neural_net_forward.1} parent=1 // pred_check
      _
    $region47: #{neural_net_forward.1} parent=1 // pred_check_branch
      %449 = sbr.rel (0) target = $region49
    $region48: #{neural_net_forward.1} parent=1 // pred_region
      _
    $region49: #{neural_net_forward.1} parent=1 // pred_fallthru
      _
    %450 = vsyncpa [#allocation3], 1
    %451 = vsyncpa [#allocation5], 1

</llo_original>
